<compile_context>
chip_gen: v7x
topology: tpu7x:2x2x1
jax: 0.10.0
libtpu: 0.0.40
codegen_flags: <defaults>
</compile_context>

<pallas_src>
import jax
import jax.numpy as jnp
from jax.experimental import pallas as pl
from jax.experimental.pallas import tpu as pltpu

_LANE = 128  # lane width (last dim)


def _round_up(x: int, m: int) -> int:
    return ((x + m - 1) // m) * m


def _cdiv(a: int, b: int) -> int:
    return (a + b - 1) // b


def _sublane(dtype) -> int:
    # Sublane packing: 8 rows for f32, 16 for bf16, 32 for int8/fp8.
    return max(8, (8 * 4) // jnp.dtype(dtype).itemsize)


def _device_kind() -> str:
    try:
        return jax.devices()[0].device_kind.lower()
    except Exception:
        return ""


def _copy_kernel(x_ref, o_ref):
    # Identical (tr, tl) blocks for input and output -> straight copy.
    o_ref[...] = x_ref[...]


def _prefix_copy_kernel(x_ref, o_ref):
    # Input block (tr, lin), output block (tr, l_out): copy the length prefix.
    o_ref[...] = x_ref[:, : o_ref.shape[-1]]


def chomp1d(x: jax.Array, chomp_size: int) -> jax.Array:
    """Pallas implementation of Chomp1d.forward for x of shape (N, C, L)."""
    if chomp_size <= 0:
        return x
    n, c, l = x.shape
    l_out = l - chomp_size
    if l_out <= 0:
        raise ValueError("chomp_size must be smaller than the length dimension")

    r = n * c
    x2 = x.reshape(r, l)  # (rows, length); contiguous, so the reshape is free
    out_shape = jax.ShapeDtypeStruct((r, l_out), x.dtype)

    itemsize = jnp.dtype(x.dtype).itemsize
    sub = _sublane(x.dtype)
    kind = _device_kind()

    # Per-tile *input* byte budget: ~4 MiB on v6e/v7x, ~2 MiB otherwise (v5e's
    # 16 MiB scoped-VMEM default).  Double-buffered (in + out) working set is
    # therefore ~16 MiB / ~8 MiB respectively.
    tile_bytes = (4 if ("v6" in kind or "v7" in kind) else 2) * 1024 * 1024
    tl_cap = max(_LANE, (tile_bytes // (256 * itemsize)) // _LANE * _LANE)

    if l_out > tl_cap:
        # Tiled path: balanced lane-aligned length tiles; in/out blocks match.
        nl = _cdiv(l_out, tl_cap)
        tl = _round_up(_cdiv(l_out, nl), _LANE)
        nl = _cdiv(l_out, tl)
        lin = tl
        kernel = _copy_kernel
    else:
        # Single length block: read only the lane-rounded prefix of each row
        # (never the whole chomped tail unless L itself is that small).
        nl = 1
        tl = l_out                      # == full output length -> layout-legal
        lin = _round_up(l_out, _LANE)
        if lin > l:
            lin = l                     # full input length -> layout-legal
        kernel = _prefix_copy_kernel

    # Row tile: fill the byte budget, multiple of the dtype's sublane packing,
    # capped at 512 rows, balanced so the last row block is not near-empty.
    tr_cap = max(sub, min(512, (tile_bytes // (lin * itemsize)) // sub * sub))
    if r <= tr_cap:
        tr = r                          # single full-extent row block (legal)
        nr = 1
    else:
        nr = _cdiv(r, tr_cap)
        tr = _round_up(_cdiv(r, nr), sub)
        nr = _cdiv(r, tr)

    # v7x: two TensorCores share the grid via dimension_semantics; make sure
    # there are >= 2 grid points along a parallel axis when rows allow it.
    if "v7" in kind and nr * nl < 2 and r >= 2 * sub:
        tr = _round_up(_cdiv(r, 2), sub)
        nr = _cdiv(r, tr)

    y2 = pl.pallas_call(
        kernel,
        out_shape=out_shape,
        grid_spec=pltpu.PrefetchScalarGridSpec(
            num_scalar_prefetch=0,
            grid=(nr, nl),
            in_specs=[pl.BlockSpec((tr, lin), lambda i, j: (i, j))],
            out_specs=pl.BlockSpec((tr, tl), lambda i, j: (i, j)),
        ),
        compiler_params=pltpu.CompilerParams(
            dimension_semantics=("parallel", "parallel"),
        ),
    )(x2)

    return y2.reshape(n, c, l_out)


if __name__ == "__main__":
    key = jax.random.PRNGKey(0)
    k1, k2, k3, k4 = jax.random.split(key, 4)

    # --- 1) Small TCN-like activation (single length block, full-L input block).
    N, C, L, ch = 2, 4, 16, 3
    x = jax.random.normal(k1, (N, C, L), dtype=jnp.float32)
    y = chomp1d(x, ch)
    jax.block_until_ready(y)
    assert y.shape == (N, C, L - ch)
    assert y.dtype == x.dtype
    assert jnp.array_equal(y, x[:, :, :-ch])

    # --- 2) chomp_size == 0 returns the input unchanged.
    y0 = chomp1d(x, 0)
    jax.block_until_ready(y0)
    assert jnp.array_equal(y0, x)

    # --- 3) Lane-rounded prefix read (input block narrower than L).
    N3, C3, L3, ch3 = 2, 4, 300, 50
    x3 = jax.random.normal(k2, (N3, C3, L3), dtype=jnp.float32)
    y3 = chomp1d(x3, ch3)
    jax.block_until_ready(y3)
    assert jnp.array_equal(y3, x3[:, :, :-ch3])

    # --- 4) bf16 input exercising the dtype-aware sublane packing.
    N4, C4, L4, ch4 = 2, 8, 300, 44
    x4 = jax.random.normal(k3, (N4, C4, L4), dtype=jnp.bfloat16)
    y4 = chomp1d(x4, ch4)
    jax.block_until_ready(y4)
    assert jnp.array_equal(y4, x4[:, :, :-ch4])

    # --- 5) Longer sequence exercising the lane-tiled path (l_out > tile cap),
    #        including a partial final length tile.
    N5, C5, L5, ch5 = 2, 4, 4500, 4
    x5 = jax.random.normal(k4, (N5, C5, L5), dtype=jnp.float32)
    y5 = chomp1d(x5, ch5)
    jax.block_until_ready(y5)
    assert y5.shape == (N5, C5, L5 - ch5)
    assert jnp.array_equal(y5, x5[:, :, :-ch5])

    print("KERNEL_OK")
</pallas_src>

<mosaic_0001>
module attributes {stable_mosaic.version = 11 : i64} {
  func.func @_prefix_copy_kernel(%arg0: i32, %arg1: i32, %arg2: memref<8x16xf32, #tpu.memory_space<vmem>>, %arg3: memref<8x13xf32, #tpu.memory_space<vmem>>) attributes {dimension_semantics = [#tpu.dimension_semantics<parallel>, #tpu.dimension_semantics<parallel>], iteration_bounds = array<i64: 1, 1>, scalar_prefetch = 0 : i64, scratch_operands = 0 : i64, tpu.core_type = #tpu.core_type<tc>, window_params = [{transform_indices = @transform_0, window_bounds = array<i64: 8, 16>}, {transform_indices = @transform_1, window_bounds = array<i64: 8, 13>}]} {
    %c0 = arith.constant 0 : index
    %c0_0 = arith.constant 0 : index
    %0 = vector.load %arg2[%c0, %c0_0] : memref<8x16xf32, #tpu.memory_space<vmem>>, vector<8x13xf32>
    %c0_1 = arith.constant 0 : index
    %c0_2 = arith.constant 0 : index
    %1 = vector.load %arg3[%c0_1, %c0_2] : memref<8x13xf32, #tpu.memory_space<vmem>>, vector<8x13xf32>
    tpu.vector_store %arg3[%c0_1, %c0_2], %0 {strides = array<i32>} : memref<8x13xf32, #tpu.memory_space<vmem>>, vector<8x13xf32>,
    return
  }
  func.func @transform_0(%arg0: i32, %arg1: i32) -> (i32, i32) {
    %c0_i32 = arith.constant 0 : i32
    return %arg0, %arg1 : i32, i32
  }
  func.func @transform_1(%arg0: i32, %arg1: i32) -> (i32, i32) {
    %c0_i32 = arith.constant 0 : i32
    return %arg0, %arg1 : i32, i32
  }
}

</mosaic_0001>

<llo_original>
// kernel: tpu_custom_call.1
$region0: #{tpu_custom_call.1}
  #allocation0 [shape = 'u32[]', space=smem, size = 0x4, offset = 0x4, fixed_abs, tag = 'smem constant byte address 0x4 - core index']
  #allocation1 [shape = 'u32[144,128]{1,0:T(1,128)}', space=vmem, size = 0x12000, scoped, tag = 'internal scratch']
  %s0 = inlined_call_operand.hbm [shape: f32[8,16], index: 0, kind: input, shape index: {}]
  %s1 = inlined_call_operand.hbm [shape: f32[8,13], index: 1, kind: output, shape index: {}]
  %s2 = sld [smem:[#allocation0]]
  $region18: #{tpu_custom_call.1} parent=0
    _
  %s4 = ssub.s32 1, %s2
  %s5 = scalar_select 0, %s4, %s2
  $region1: #{tpu_custom_call.1} parent=0
    #allocation2 [shape = 'u8[4096]{0}', space=vmem, size = 0x1000, scoped, tag = 'input window, operand 0, single buffered']
    #allocation3 [shape = 's32[1]{0}', space=sflag, size = 0x4, scoped, tag = 'scoped memory for tpu_custom_call.1']
    #allocation4 [shape = 's32[1]{0}', space=sflag, size = 0x4, scoped, tag = 'scoped memory for tpu_custom_call.1']
    #allocation5 [shape = 'u8[4096]{0}', space=vmem, size = 0x1000, scoped, tag = 'output window, operand 0, single buffered']
    %6 = vsyncpa [#allocation3], 0
    %7 = vsyncpa [#allocation4], 0
    // Predicated region
    $region2: #{tpu_custom_call.1} parent=1 // pred_check
      _
    $region3: #{tpu_custom_call.1} parent=1 // pred_check_branch
      %9 = sbr.rel (0) target = $region5
    $region4: #{tpu_custom_call.1} parent=1 // pred_region
      %s11 = ssub.s32 128, 128
      %12 = vsyncadd [#allocation3], %s11
      %s14 = sshll.u32 [#allocation2], 4
      %s15 = int_to_ptr.vmem [resolvable:$true] %s14
      %17 = dma.hbm_to_vmem [thread:$0]  %s0, 128, %s15, [#allocation3]
    $region5: #{tpu_custom_call.1} parent=1 // pred_fallthru
      _
    // Predicated region
    $region6: #{tpu_custom_call.1} parent=1 // pred_check
      _
    $region7: #{tpu_custom_call.1} parent=1 // pred_check_branch
      %19 = sbr.rel (0) target = $region9
    $region8: #{tpu_custom_call.1} parent=1 // pred_region
      %20 = dma.done [#allocation3], 128
    $region9: #{tpu_custom_call.1} parent=1 // pred_fallthru
      _
    %v21 = vld [vmem:[#allocation2] sm:$0xff]
    %vm22 = vcmask 105472
    %23 = vst.msk [vmem:[#allocation5] sm:$0xff] %vm22, %v21
    // Predicated region
    $region10: #{tpu_custom_call.1} parent=1 // pred_check
      _
    $region11: #{tpu_custom_call.1} parent=1 // pred_check_branch
      %25 = sbr.rel (0) target = $region13
    $region12: #{tpu_custom_call.1} parent=1 // pred_region
      %s27 = ssub.s32 128, 128
      %28 = vsyncadd [#allocation4], %s27
      %s30 = sshll.u32 [#allocation5], 4
      %s31 = int_to_ptr.vmem [resolvable:$true] %s30
      %33 = dma.vmem_to_hbm [thread:$0]  %s31, 128, %s1, [#allocation4]
    $region13: #{tpu_custom_call.1} parent=1 // pred_fallthru
      _
    // Predicated region
    $region14: #{tpu_custom_call.1} parent=1 // pred_check
      _
    $region15: #{tpu_custom_call.1} parent=1 // pred_check_branch
      %35 = sbr.rel (0) target = $region17
    $region16: #{tpu_custom_call.1} parent=1 // pred_region
      %36 = dma.done [#allocation4], 128
    $region17: #{tpu_custom_call.1} parent=1 // pred_fallthru
      _
    %37 = vsyncpa [#allocation3], 1
    %38 = vsyncpa [#allocation4], 1

</llo_original>
